<compile_context>
chip_gen: v7x
topology: tpu7x:2x2x1
jax: 0.10.0
libtpu: 0.0.40
codegen_flags: <defaults>
</compile_context>

<pallas_src>
import functools

import jax
import jax.numpy as jnp
from jax.experimental import pallas as pl
from jax.experimental.pallas import tpu as pltpu

# ---- model dims (small, consistent with the module) ------------------------
BATCH = 2
BATCH_PAD = 8          # fill the f32 sublanes; extra rows are discarded
INPUT_SIZE = 16
OUTPUT_SIZE = 16
HIDDEN = 32
N_LAYERS = 2
SEQ_LEN = 8            # timesteps rolled out inside one pallas_call


def _lstm_svg_rollout_kernel(
    x_ref, w0_ref, wih_ref, whh_ref, ball_ref, wo_ref, bo_ref, hc0_ref,
    out_ref, hc_out_ref, hc_scr,
    *, n_layers, hidden,
):
    h = hidden
    t = pl.program_id(0)

    # t == 0: load the packed incoming state [h_0..h_{L-1} | c_0..c_{L-1}]
    # into the VMEM scratch that carries it across grid steps.
    @pl.when(t == 0)
    def _():
        hc_scr[...] = hc0_ref[...]

    hc = hc_scr[...]                                  # (B, 2*L*H), prev-step state
    x = x_ref[0]                                      # (B, INPUT), this step's input

    # One MXU pass for every layer's recurrent contribution; W_hh_packed is
    # block-diagonal over the h rows and zero over the c rows, so the extra
    # MACs are exact zeros. Fused gate biases added here, off the serial chain.
    hh_all = (
        jnp.dot(hc, whh_ref[...], preferred_element_type=jnp.float32)
        + ball_ref[...]
    )                                                 # (B, L*4H)

    h_in = None
    for l in range(n_layers):
        if l == 0:
            # embed Linear folded into layer-0 gate weights host-side
            ih = jnp.dot(x, w0_ref[...], preferred_element_type=jnp.float32)
        else:
            ih = jnp.dot(h_in, wih_ref[l - 1],
                         preferred_element_type=jnp.float32)
        gates = ih + hh_all[:, l * 4 * h:(l + 1) * 4 * h]   # (B, 4H), (i,f,g,o)

        # two EUP passes instead of four: full-width sigmoid + one tanh slice
        sg = jax.nn.sigmoid(gates)
        i_g = sg[:, 0 * h:1 * h]
        f_g = sg[:, 1 * h:2 * h]
        o_g = sg[:, 3 * h:4 * h]
        g_g = jnp.tanh(gates[:, 2 * h:3 * h])

        c_prev = hc[:, (n_layers + l) * h:(n_layers + l + 1) * h]
        c_new = f_g * c_prev + i_g * g_g
        h_new = o_g * jnp.tanh(c_new)

        # assemble the new packed state in place (no concatenate):
        # lane-aligned slice stores into the carried scratch slab
        hc_scr[:, l * h:(l + 1) * h] = h_new
        hc_scr[:, (n_layers + l) * h:(n_layers + l + 1) * h] = c_new
        h_in = h_new

    # output: Linear(hidden -> output_size) + Tanh, streamed per step
    out_ref[0] = jnp.tanh(
        jnp.dot(h_in, wo_ref[...], preferred_element_type=jnp.float32)
        + bo_ref[...]
    )

    # final step: flush the carried state to the (aliased) packed output
    @pl.when(t == pl.num_programs(0) - 1)
    def _():
        hc_out_ref[...] = hc_scr[...]


def lstm_svg_rollout(x_seq, packed, hc0, *, n_layers=N_LAYERS):
    """Runs T sequential applications of lstm_svg.forward in ONE Pallas call.

    x_seq: (T, B, input_size); hc0: packed state (B, 2*n_layers*hidden) laid
    out [h_0..h_{L-1} | c_0..c_{L-1}].  Returns (out_seq (T, B, output_size),
    new packed state like hc0).  The packed-state input buffer is donated to
    the state output (input_output_aliases) — don't reuse it after the call.
    """
    seq, batch, in_size = x_seq.shape
    hidden = packed["w_out"].shape[0]
    out_size = packed["w_out"].shape[1]
    state = 2 * n_layers * hidden

    # pad batch to a multiple of 8 (f32 sublane fill); padded rows discarded
    b_pad = max(8, -(-batch // 8) * 8)
    if b_pad != batch:
        x_seq = jnp.pad(x_seq, ((0, 0), (0, b_pad - batch), (0, 0)))
        hc0 = jnp.pad(hc0, ((0, b_pad - batch), (0, 0)))

    def const_spec(shape):
        # full-array block, constant index -> DMA'd once, VMEM-resident
        return pl.BlockSpec(shape, lambda t, _n=len(shape): (0,) * _n)

    kernel = functools.partial(
        _lstm_svg_rollout_kernel, n_layers=n_layers, hidden=hidden)

    out_seq, hc_new = pl.pallas_call(
        kernel,
        grid=(seq,),
        in_specs=[
            pl.BlockSpec((1, b_pad, in_size), lambda t: (t, 0, 0)),  # x streamed
            const_spec(packed["w0"].shape),
            const_spec(packed["w_ih_rest"].shape),
            const_spec(packed["w_hh_packed"].shape),
            const_spec(packed["b_all"].shape),
            const_spec(packed["w_out"].shape),
            const_spec(packed["b_out"].shape),
            const_spec((b_pad, state)),                              # hc0
        ],
        out_specs=(
            pl.BlockSpec((1, b_pad, out_size), lambda t: (t, 0, 0)),
            pl.BlockSpec((b_pad, state), lambda t: (0, 0)),
        ),
        out_shape=(
            jax.ShapeDtypeStruct((seq, b_pad, out_size), jnp.float32),
            jax.ShapeDtypeStruct((b_pad, state), jnp.float32),
        ),
        scratch_shapes=[pltpu.VMEM((b_pad, state), jnp.float32)],
        input_output_aliases={7: 1},   # packed state updated in place
        compiler_params=pltpu.CompilerParams(
            dimension_semantics=("arbitrary",)),   # time axis is sequential
    )(
        x_seq,
        packed["w0"], packed["w_ih_rest"], packed["w_hh_packed"],
        packed["b_all"], packed["w_out"], packed["b_out"],
        hc0,
    )
    return out_seq[:, :batch], hc_new[:batch]


# ---- deterministic parameter init (synthetic; no checkpoint load) ----------
def init_raw_params(key):
    """Unfused params mirroring the torch module (weights stored as (in, out),
    LSTMCell gate order (i, f, g, o) along the out axis)."""
    ks = jax.random.split(key, 8)
    s_e = 1.0 / jnp.sqrt(INPUT_SIZE)
    s_h = 1.0 / jnp.sqrt(HIDDEN)

    def unif(k, shape, scale):
        return jax.random.uniform(k, shape, jnp.float32, -scale, scale)

    return {
        "w_embed": unif(ks[0], (INPUT_SIZE, HIDDEN), s_e),
        "b_embed": unif(ks[1], (1, HIDDEN), s_e),
        "w_ih": unif(ks[2], (N_LAYERS, HIDDEN, 4 * HIDDEN), s_h),
        "w_hh": unif(ks[3], (N_LAYERS, HIDDEN, 4 * HIDDEN), s_h),
        "b_ih": unif(ks[4], (N_LAYERS, 1, 4 * HIDDEN), s_h),
        "b_hh": unif(ks[5], (N_LAYERS, 1, 4 * HIDDEN), s_h),
        "w_out": unif(ks[6], (HIDDEN, OUTPUT_SIZE), s_h),
        "b_out": unif(ks[7], (1, OUTPUT_SIZE), s_h),
    }


def pack_params(raw, *, n_layers=N_LAYERS, hidden=HIDDEN):
    """Host-side (one-time) weight fusion for the kernel."""
    h = hidden
    # embed Linear folded into layer-0 gate weights / bias
    w0 = raw["w_embed"] @ raw["w_ih"][0]                      # (IN, 4H)
    b_all = jnp.concatenate(
        [raw["b_ih"][l] + raw["b_hh"][l] for l in range(n_layers)], axis=-1)
    b_all = b_all.at[:, :4 * h].add(raw["b_embed"] @ raw["w_ih"][0])
    # all layers' recurrent weights as one block-diagonal (2LH, L*4H) matrix;
    # rows for the c lanes stay zero
    whh_packed = jnp.zeros((2 * n_layers * h, n_layers * 4 * h), jnp.float32)
    for l in range(n_layers):
        whh_packed = whh_packed.at[
            l * h:(l + 1) * h, l * 4 * h:(l + 1) * 4 * h].set(raw["w_hh"][l])
    return {
        "w0": w0,
        "w_ih_rest": raw["w_ih"][1:],
        "w_hh_packed": whh_packed,
        "b_all": b_all,
        "w_out": raw["w_out"],
        "b_out": raw["b_out"],
    }


def pack_state(h0, c0):
    n_layers = h0.shape[0]
    return jnp.concatenate(
        [h0[l] for l in range(n_layers)] + [c0[l] for l in range(n_layers)],
        axis=-1)


def unpack_state(hc, *, n_layers=N_LAYERS, hidden=HIDDEN):
    h = hidden
    hs = jnp.stack([hc[:, l * h:(l + 1) * h] for l in range(n_layers)])
    cs = jnp.stack([hc[:, (n_layers + l) * h:(n_layers + l + 1) * h]
                    for l in range(n_layers)])
    return hs, cs


# ---- pure-JAX reference (mirrors T sequential torch forward calls) ----------
def reference_rollout(x_seq, raw, h0, c0):
    hd = HIDDEN
    h = [h0[l] for l in range(N_LAYERS)]
    c = [c0[l] for l in range(N_LAYERS)]
    outs = []
    for t in range(x_seq.shape[0]):
        h_in = x_seq[t] @ raw["w_embed"] + raw["b_embed"]
        for l in range(N_LAYERS):
            gates = (h_in @ raw["w_ih"][l] + h[l] @ raw["w_hh"][l]
                     + raw["b_ih"][l] + raw["b_hh"][l])
            i_g = jax.nn.sigmoid(gates[:, 0 * hd:1 * hd])
            f_g = jax.nn.sigmoid(gates[:, 1 * hd:2 * hd])
            g_g = jnp.tanh(gates[:, 2 * hd:3 * hd])
            o_g = jax.nn.sigmoid(gates[:, 3 * hd:4 * hd])
            c[l] = f_g * c[l] + i_g * g_g
            h[l] = o_g * jnp.tanh(c[l])
            h_in = h[l]
        outs.append(jnp.tanh(h_in @ raw["w_out"] + raw["b_out"]))
    return jnp.stack(outs), jnp.stack(h), jnp.stack(c)


if __name__ == "__main__":
    key = jax.random.PRNGKey(0)
    k_param, k_x = jax.random.split(key)

    raw = init_raw_params(k_param)
    packed = pack_params(raw)

    x_seq = jax.random.normal(k_x, (SEQ_LEN, BATCH, INPUT_SIZE), jnp.float32)

    # init_hidden(): zeros for every layer
    h0 = jnp.zeros((N_LAYERS, BATCH, HIDDEN), jnp.float32)
    c0 = jnp.zeros((N_LAYERS, BATCH, HIDDEN), jnp.float32)
    hc0 = pack_state(h0, c0)   # pack/unpack done once, outside the rollout

    out_seq, hc_new = lstm_svg_rollout(x_seq, packed, hc0)
    jax.block_until_ready((out_seq, hc_new))
    h_new, c_new = unpack_state(hc_new)

    with jax.default_matmul_precision("float32"):
        ref_out, ref_h, ref_c = reference_rollout(x_seq, raw, h0, c0)
    jax.block_until_ready((ref_out, ref_h, ref_c))

    assert out_seq.shape == (SEQ_LEN, BATCH, OUTPUT_SIZE)
    assert h_new.shape == (N_LAYERS, BATCH, HIDDEN)
    assert c_new.shape == (N_LAYERS, BATCH, HIDDEN)
    # Host-side embed folding changes matmul association vs. the unfused
    # reference (and TPU default matmul precision may differ between the
    # XLA reference and the in-kernel dots), so allow a modest tolerance.
    assert jnp.allclose(out_seq, ref_out, atol=5e-3, rtol=5e-3), \
        float(jnp.max(jnp.abs(out_seq - ref_out)))
    assert jnp.allclose(h_new, ref_h, atol=5e-3, rtol=5e-3), \
        float(jnp.max(jnp.abs(h_new - ref_h)))
    assert jnp.allclose(c_new, ref_c, atol=5e-3, rtol=5e-3), \
        float(jnp.max(jnp.abs(c_new - ref_c)))

    print("KERNEL_OK")
</pallas_src>

<mosaic_0001>
module attributes {stable_mosaic.version = 11 : i64} {
  func.func @_lstm_svg_rollout_kernel(%arg0: i32, %arg1: memref<1x8x16xf32, #tpu.memory_space<vmem>>, %arg2: memref<16x128xf32, #tpu.memory_space<vmem>>, %arg3: memref<1x32x128xf32, #tpu.memory_space<vmem>>, %arg4: memref<128x256xf32, #tpu.memory_space<vmem>>, %arg5: memref<1x256xf32, #tpu.memory_space<vmem>>, %arg6: memref<32x16xf32, #tpu.memory_space<vmem>>, %arg7: memref<1x16xf32, #tpu.memory_space<vmem>>, %arg8: memref<8x128xf32, #tpu.memory_space<vmem>>, %arg9: memref<1x8x16xf32, #tpu.memory_space<vmem>>, %arg10: memref<8x128xf32, #tpu.memory_space<vmem>>, %arg11: memref<8x128xf32, #tpu.memory_space<vmem>>) attributes {dimension_semantics = [#tpu.dimension_semantics<arbitrary>], iteration_bounds = array<i64: 8>, scalar_prefetch = 0 : i64, scratch_operands = 1 : i64, tpu.core_type = #tpu.core_type<tc>, window_params = [{transform_indices = @transform_0, window_bounds = array<i64: 1, 8, 16>}, {pipeline_mode = #tpu.pipeline_mode<synchronous>, transform_indices = @transform_1, window_bounds = array<i64: 16, 128>}, {pipeline_mode = #tpu.pipeline_mode<synchronous>, transform_indices = @transform_2, window_bounds = array<i64: 1, 32, 128>}, {pipeline_mode = #tpu.pipeline_mode<synchronous>, transform_indices = @transform_3, window_bounds = array<i64: 128, 256>}, {pipeline_mode = #tpu.pipeline_mode<synchronous>, transform_indices = @transform_4, window_bounds = array<i64: 1, 256>}, {pipeline_mode = #tpu.pipeline_mode<synchronous>, transform_indices = @transform_5, window_bounds = array<i64: 32, 16>}, {pipeline_mode = #tpu.pipeline_mode<synchronous>, transform_indices = @transform_6, window_bounds = array<i64: 1, 16>}, {pipeline_mode = #tpu.pipeline_mode<synchronous>, transform_indices = @transform_7, window_bounds = array<i64: 8, 128>}, {transform_indices = @transform_8, window_bounds = array<i64: 1, 8, 16>}, {pipeline_mode = #tpu.pipeline_mode<synchronous>, transform_indices = @transform_9, window_bounds = array<i64: 8, 128>}]} {
    %c0_i32 = arith.constant 0 : i32
    %0 = arith.cmpi eq, %arg0, %c0_i32 : i32
    %1 = arith.extui %0 : i1 to i32
    %c0_i32_0 = arith.constant 0 : i32
    %2 = arith.cmpi ne, %1, %c0_i32_0 : i32
    scf.if %2 {
      %c0_32 = arith.constant 0 : index
      %c0_33 = arith.constant 0 : index
      %68 = vector.load %arg8[%c0_32, %c0_33] : memref<8x128xf32, #tpu.memory_space<vmem>>, vector<8x128xf32>
      %c0_34 = arith.constant 0 : index
      %c0_35 = arith.constant 0 : index
      %69 = vector.load %arg11[%c0_34, %c0_35] : memref<8x128xf32, #tpu.memory_space<vmem>>, vector<8x128xf32>
      tpu.vector_store %arg11[%c0_34, %c0_35], %68 {strides = array<i32>} : memref<8x128xf32, #tpu.memory_space<vmem>>, vector<8x128xf32>,
    } else {
    }
    %c0 = arith.constant 0 : index
    %c0_1 = arith.constant 0 : index
    %3 = vector.load %arg11[%c0, %c0_1] : memref<8x128xf32, #tpu.memory_space<vmem>>, vector<8x128xf32>
    %c0_2 = arith.constant 0 : index
    %c0_3 = arith.constant 0 : index
    %c0_4 = arith.constant 0 : index
    %4 = vector.load %arg1[%c0_2, %c0_3, %c0_4] : memref<1x8x16xf32, #tpu.memory_space<vmem>>, vector<1x8x16xf32>
    %5 = vector.shape_cast %4 : vector<1x8x16xf32> to vector<8x16xf32>
    %c0_5 = arith.constant 0 : index
    %c0_6 = arith.constant 0 : index
    %6 = vector.load %arg4[%c0_5, %c0_6] : memref<128x256xf32, #tpu.memory_space<vmem>>, vector<128x256xf32>
    %cst = arith.constant dense<0.000000e+00> : vector<8x256xf32>
    %7 = tpu.matmul %3, %6, %cst {dimension_numbers = #tpu.dot_dimension_numbers<[1], [0], [0], [1], [0, 0, 1, 1], [], []>} : vector<8x128xf32>, vector<128x256xf32>, vector<8x256xf32> -> vector<8x256xf32>
    %c0_7 = arith.constant 0 : index
    %c0_8 = arith.constant 0 : index
    %8 = vector.load %arg5[%c0_7, %c0_8] : memref<1x256xf32, #tpu.memory_space<vmem>>, vector<1x256xf32>
    %9 = vector.broadcast %8 : vector<1x256xf32> to vector<8x256xf32>
    %10 = arith.addf %7, %9 : vector<8x256xf32>
    %c0_9 = arith.constant 0 : index
    %c0_10 = arith.constant 0 : index
    %11 = vector.load %arg2[%c0_9, %c0_10] : memref<16x128xf32, #tpu.memory_space<vmem>>, vector<16x128xf32>
    %cst_11 = arith.constant dense<0.000000e+00> : vector<8x128xf32>
    %12 = tpu.matmul %5, %11, %cst_11 {dimension_numbers = #tpu.dot_dimension_numbers<[1], [0], [0], [1], [0, 0, 1, 1], [], []>} : vector<8x16xf32>, vector<16x128xf32>, vector<8x128xf32> -> vector<8x128xf32>
    %13 = vector.extract_strided_slice %10 {offsets = [0, 0], sizes = [8, 128], strides = [1, 1]} : vector<8x256xf32> to vector<8x128xf32>
    %14 = arith.addf %12, %13 : vector<8x128xf32>
    %15 = arith.negf %14 : vector<8x128xf32>
    %16 = math.exp %15 : vector<8x128xf32>
    %cst_12 = arith.constant 1.000000e+00 : f32
    %17 = vector.broadcast %cst_12 : f32 to vector<8x128xf32>
    %18 = arith.addf %17, %16 : vector<8x128xf32>
    %19 = arith.divf %17, %18 : vector<8x128xf32>
    %20 = vector.extract_strided_slice %19 {offsets = [0, 0], sizes = [8, 32], strides = [1, 1]} : vector<8x128xf32> to vector<8x32xf32>
    %21 = vector.extract_strided_slice %19 {offsets = [0, 32], sizes = [8, 32], strides = [1, 1]} : vector<8x128xf32> to vector<8x32xf32>
    %22 = vector.extract_strided_slice %19 {offsets = [0, 96], sizes = [8, 32], strides = [1, 1]} : vector<8x128xf32> to vector<8x32xf32>
    %23 = vector.extract_strided_slice %14 {offsets = [0, 64], sizes = [8, 32], strides = [1, 1]} : vector<8x128xf32> to vector<8x32xf32>
    %24 = math.tanh %23 : vector<8x32xf32>
    %25 = vector.extract_strided_slice %3 {offsets = [0, 64], sizes = [8, 32], strides = [1, 1]} : vector<8x128xf32> to vector<8x32xf32>
    %26 = arith.mulf %21, %25 : vector<8x32xf32>
    %27 = arith.mulf %20, %24 : vector<8x32xf32>
    %28 = arith.addf %26, %27 : vector<8x32xf32>
    %29 = math.tanh %28 : vector<8x32xf32>
    %30 = arith.mulf %22, %29 : vector<8x32xf32>
    %c0_13 = arith.constant 0 : index
    %c0_14 = arith.constant 0 : index
    %31 = vector.load %arg11[%c0_13, %c0_14] : memref<8x128xf32, #tpu.memory_space<vmem>>, vector<8x32xf32>
    tpu.vector_store %arg11[%c0_13, %c0_14], %30 {strides = array<i32>} : memref<8x128xf32, #tpu.memory_space<vmem>>, vector<8x32xf32>,
    %c0_15 = arith.constant 0 : index
    %c64 = arith.constant 64 : index
    %32 = vector.load %arg11[%c0_15, %c64] : memref<8x128xf32, #tpu.memory_space<vmem>>, vector<8x32xf32>
    tpu.vector_store %arg11[%c0_15, %c64], %28 {strides = array<i32>} : memref<8x128xf32, #tpu.memory_space<vmem>>, vector<8x32xf32>,
    %c0_16 = arith.constant 0 : index
    %c0_17 = arith.constant 0 : index
    %c0_18 = arith.constant 0 : index
    %33 = vector.load %arg3[%c0_16, %c0_17, %c0_18] : memref<1x32x128xf32, #tpu.memory_space<vmem>>, vector<1x32x128xf32>
    %34 = vector.shape_cast %33 : vector<1x32x128xf32> to vector<32x128xf32>
    %cst_19 = arith.constant dense<0.000000e+00> : vector<8x128xf32>
    %35 = tpu.matmul %30, %34, %cst_19 {dimension_numbers = #tpu.dot_dimension_numbers<[1], [0], [0], [1], [0, 0, 1, 1], [], []>} : vector<8x32xf32>, vector<32x128xf32>, vector<8x128xf32> -> vector<8x128xf32>
    %36 = vector.extract_strided_slice %10 {offsets = [0, 128], sizes = [8, 128], strides = [1, 1]} : vector<8x256xf32> to vector<8x128xf32>
    %37 = arith.addf %35, %36 : vector<8x128xf32>
    %38 = arith.negf %37 : vector<8x128xf32>
    %39 = math.exp %38 : vector<8x128xf32>
    %cst_20 = arith.constant 1.000000e+00 : f32
    %40 = vector.broadcast %cst_20 : f32 to vector<8x128xf32>
    %41 = arith.addf %40, %39 : vector<8x128xf32>
    %42 = arith.divf %40, %41 : vector<8x128xf32>
    %43 = vector.extract_strided_slice %42 {offsets = [0, 0], sizes = [8, 32], strides = [1, 1]} : vector<8x128xf32> to vector<8x32xf32>
    %44 = vector.extract_strided_slice %42 {offsets = [0, 32], sizes = [8, 32], strides = [1, 1]} : vector<8x128xf32> to vector<8x32xf32>
    %45 = vector.extract_strided_slice %42 {offsets = [0, 96], sizes = [8, 32], strides = [1, 1]} : vector<8x128xf32> to vector<8x32xf32>
    %46 = vector.extract_strided_slice %37 {offsets = [0, 64], sizes = [8, 32], strides = [1, 1]} : vector<8x128xf32> to vector<8x32xf32>
    %47 = math.tanh %46 : vector<8x32xf32>
    %48 = vector.extract_strided_slice %3 {offsets = [0, 96], sizes = [8, 32], strides = [1, 1]} : vector<8x128xf32> to vector<8x32xf32>
    %49 = arith.mulf %44, %48 : vector<8x32xf32>
    %50 = arith.mulf %43, %47 : vector<8x32xf32>
    %51 = arith.addf %49, %50 : vector<8x32xf32>
    %52 = math.tanh %51 : vector<8x32xf32>
    %53 = arith.mulf %45, %52 : vector<8x32xf32>
    %c0_21 = arith.constant 0 : index
    %c32 = arith.constant 32 : index
    %54 = vector.load %arg11[%c0_21, %c32] : memref<8x128xf32, #tpu.memory_space<vmem>>, vector<8x32xf32>
    tpu.vector_store %arg11[%c0_21, %c32], %53 {strides = array<i32>} : memref<8x128xf32, #tpu.memory_space<vmem>>, vector<8x32xf32>,
    %c0_22 = arith.constant 0 : index
    %c96 = arith.constant 96 : index
    %55 = vector.load %arg11[%c0_22, %c96] : memref<8x128xf32, #tpu.memory_space<vmem>>, vector<8x32xf32>
    tpu.vector_store %arg11[%c0_22, %c96], %51 {strides = array<i32>} : memref<8x128xf32, #tpu.memory_space<vmem>>, vector<8x32xf32>,
    %c0_23 = arith.constant 0 : index
    %c0_24 = arith.constant 0 : index
    %56 = vector.load %arg6[%c0_23, %c0_24] : memref<32x16xf32, #tpu.memory_space<vmem>>, vector<32x16xf32>
    %cst_25 = arith.constant dense<0.000000e+00> : vector<8x16xf32>
    %57 = tpu.matmul %53, %56, %cst_25 {dimension_numbers = #tpu.dot_dimension_numbers<[1], [0], [0], [1], [0, 0, 1, 1], [], []>} : vector<8x32xf32>, vector<32x16xf32>, vector<8x16xf32> -> vector<8x16xf32>
    %c0_26 = arith.constant 0 : index
    %c0_27 = arith.constant 0 : index
    %58 = vector.load %arg7[%c0_26, %c0_27] : memref<1x16xf32, #tpu.memory_space<vmem>>, vector<1x16xf32>
    %59 = vector.broadcast %58 : vector<1x16xf32> to vector<8x16xf32>
    %60 = arith.addf %57, %59 : vector<8x16xf32>
    %61 = math.tanh %60 : vector<8x16xf32>
    %c0_28 = arith.constant 0 : index
    %c0_29 = arith.constant 0 : index
    %c0_30 = arith.constant 0 : index
    %62 = vector.load %arg9[%c0_28, %c0_29, %c0_30] : memref<1x8x16xf32, #tpu.memory_space<vmem>>, vector<1x8x16xf32>
    %63 = vector.shape_cast %62 : vector<1x8x16xf32> to vector<8x16xf32>
    %64 = vector.shape_cast %61 : vector<8x16xf32> to vector<1x8x16xf32>
    tpu.vector_store %arg9[%c0_28, %c0_29, %c0_30], %64 {strides = array<i32>} : memref<1x8x16xf32, #tpu.memory_space<vmem>>, vector<1x8x16xf32>,
    %c7_i32 = arith.constant 7 : i32
    %65 = arith.cmpi eq, %arg0, %c7_i32 : i32
    %66 = arith.extui %65 : i1 to i32
    %c0_i32_31 = arith.constant 0 : i32
    %67 = arith.cmpi ne, %66, %c0_i32_31 : i32
    scf.if %67 {
      %c0_32 = arith.constant 0 : index
      %c0_33 = arith.constant 0 : index
      %68 = vector.load %arg11[%c0_32, %c0_33] : memref<8x128xf32, #tpu.memory_space<vmem>>, vector<8x128xf32>
      %c0_34 = arith.constant 0 : index
      %c0_35 = arith.constant 0 : index
      %69 = vector.load %arg10[%c0_34, %c0_35] : memref<8x128xf32, #tpu.memory_space<vmem>>, vector<8x128xf32>
      tpu.vector_store %arg10[%c0_34, %c0_35], %68 {strides = array<i32>} : memref<8x128xf32, #tpu.memory_space<vmem>>, vector<8x128xf32>,
    } else {
    }
    return
  }
  func.func @transform_0(%arg0: i32) -> (i32, i32, i32) {
    %c0_i32 = arith.constant 0 : i32
    %c0_i32_0 = arith.constant 0 : i32
    %c0_i32_1 = arith.constant 0 : i32
    return %arg0, %c0_i32, %c0_i32_0 : i32, i32, i32
  }
  func.func @transform_1(%arg0: i32) -> (i32, i32) {
    %c0_i32 = arith.constant 0 : i32
    %c0_i32_0 = arith.constant 0 : i32
    %c0_i32_1 = arith.constant 0 : i32
    return %c0_i32, %c0_i32_0 : i32, i32
  }
  func.func @transform_2(%arg0: i32) -> (i32, i32, i32) {
    %c0_i32 = arith.constant 0 : i32
    %c0_i32_0 = arith.constant 0 : i32
    %c0_i32_1 = arith.constant 0 : i32
    %c0_i32_2 = arith.constant 0 : i32
    return %c0_i32, %c0_i32_0, %c0_i32_1 : i32, i32, i32
  }
  func.func @transform_3(%arg0: i32) -> (i32, i32) {
    %c0_i32 = arith.constant 0 : i32
    %c0_i32_0 = arith.constant 0 : i32
    %c0_i32_1 = arith.constant 0 : i32
    return %c0_i32, %c0_i32_0 : i32, i32
  }
  func.func @transform_4(%arg0: i32) -> (i32, i32) {
    %c0_i32 = arith.constant 0 : i32
    %c0_i32_0 = arith.constant 0 : i32
    %c0_i32_1 = arith.constant 0 : i32
    return %c0_i32, %c0_i32_0 : i32, i32
  }
  func.func @transform_5(%arg0: i32) -> (i32, i32) {
    %c0_i32 = arith.constant 0 : i32
    %c0_i32_0 = arith.constant 0 : i32
    %c0_i32_1 = arith.constant 0 : i32
    return %c0_i32, %c0_i32_0 : i32, i32
  }
  func.func @transform_6(%arg0: i32) -> (i32, i32) {
    %c0_i32 = arith.constant 0 : i32
    %c0_i32_0 = arith.constant 0 : i32
    %c0_i32_1 = arith.constant 0 : i32
    return %c0_i32, %c0_i32_0 : i32, i32
  }
  func.func @transform_7(%arg0: i32) -> (i32, i32) {
    %c0_i32 = arith.constant 0 : i32
    %c0_i32_0 = arith.constant 0 : i32
    %c0_i32_1 = arith.constant 0 : i32
    return %c0_i32, %c0_i32_0 : i32, i32
  }
  func.func @transform_8(%arg0: i32) -> (i32, i32, i32) {
    %c0_i32 = arith.constant 0 : i32
    %c0_i32_0 = arith.constant 0 : i32
    %c0_i32_1 = arith.constant 0 : i32
    return %arg0, %c0_i32, %c0_i32_0 : i32, i32, i32
  }
  func.func @transform_9(%arg0: i32) -> (i32, i32) {
    %c0_i32 = arith.constant 0 : i32
    %c0_i32_0 = arith.constant 0 : i32
    %c0_i32_1 = arith.constant 0 : i32
    return %c0_i32, %c0_i32_0 : i32, i32
  }
}

</mosaic_0001>

<llo_original>
// kernel: tpu_custom_call.1
$region0: #{tpu_custom_call.1}
  #allocation0 [shape = 'u32[]', space=smem, size = 0x4, offset = 0x4, fixed_abs, tag = 'smem constant byte address 0x4 - core index']
  #allocation1 [shape = 'u32[144,128]{1,0:T(1,128)}', space=vmem, size = 0x12000, scoped, tag = 'internal scratch']
  #allocation2 [shape = 'f32[8,128]{1,0:T(8,128)}', space=vmem, size = 0x1000, scoped, tag = 'scratch operand']
  %s0 = inlined_call_operand.vmem [shape: f32[8,8,16], index: 0, kind: input, shape index: {}]
  %s1 = inlined_call_operand.vmem [shape: f32[16,128], index: 1, kind: input, shape index: {}]
  %s2 = inlined_call_operand.hbm [shape: f32[1,32,128], index: 2, kind: input, shape index: {}]
  %s3 = inlined_call_operand.hbm [shape: f32[128,256], index: 3, kind: input, shape index: {}]
  %s4 = inlined_call_operand.vmem [shape: f32[1,256], index: 4, kind: input, shape index: {}]
  %s5 = inlined_call_operand.vmem [shape: f32[32,16], index: 5, kind: input, shape index: {}]
  %s6 = inlined_call_operand.vmem [shape: f32[1,16], index: 6, kind: input, shape index: {}]
  %s7 = inlined_call_operand.hbm [shape: f32[8,128], index: 7, kind: input, shape index: {}, may-alias: {7,9}]
  %s8 = inlined_call_operand.hbm [shape: f32[8,8,16], index: 8, kind: output, shape index: {0}]
  %s9 = inlined_call_operand.hbm [shape: f32[8,128], index: 9, kind: output, shape index: {1}, may-alias: {7,9}]
  %10 = xla_tuple %s8, %s9
  %s11 = sld [smem:[#allocation0]]
  $region93: #{tpu_custom_call.1} parent=0
    _
  %s13 = ssub.s32 1, %s11
  %s14 = scalar_select 0, %s13, %s11
  $region1: #{tpu_custom_call.1} parent=0
    #allocation3 [shape = 'u8[16384]{0}', space=vmem, size = 0x4000, scoped, tag = 'input window, operand 2, single buffered']
    #allocation4 [shape = 's32[2]{0}', space=sflag, size = 0x8, scoped, tag = 'scoped memory for tpu_custom_call.1']
    #allocation5 [shape = 's32[2]{0}', space=sflag, size = 0x8, scoped, tag = 'scoped memory for tpu_custom_call.1']
    #allocation6 [shape = 'u8[131072]{0}', space=vmem, size = 0x20000, scoped, tag = 'input window, operand 3, single buffered']
    #allocation7 [shape = 's32[1]{0}', space=sflag, size = 0x4, scoped, tag = 'scoped memory for tpu_custom_call.1']
    #allocation8 [shape = 'u8[4096]{0}', space=vmem, size = 0x1000, scoped, tag = 'input window, operand 7, single buffered']
    #allocation9 [shape = 'u8[8192]{0}', space=vmem, size = 0x2000, scoped, tag = 'output window, operand 0']
    #allocation10 [shape = 'u8[4096]{0}', space=vmem, size = 0x1000, scoped, tag = 'output window, operand 1, single buffered']
    #allocation11 [shape = 's32[1]{0}', space=sflag, size = 0x4, scoped, tag = 'scoped memory for tpu_custom_call.1']
    %15 = vsyncpa [#allocation4], 0
    %16 = vsyncpa [#allocation7], 0
    %17 = vsyncpa [#allocation5], 0
    %s18 = scalar_lea.sflag [#allocation5], 1
    %19 = vsyncpa %s18, 0
    %20 = vsyncpa [#allocation11], 0
    loop: start=0, step=1, limit=10
    $region2: #{tpu_custom_call.1} parent=1 // loop_pre_header
      _
    $region3: #{tpu_custom_call.1} parent=1 // loop_header
      %s22 = sphi 0, %s26
      %p23 = scmp.ge.s32.totalorder %s22, 10
      %s32 = sphi 0, %s34
      %s35 = sphi 0, %s32
      %s36 = sphi 0, %s35
      %s52 = sphi 0, %s36
      %s56 = sphi 0, %s56
      %s58 = sphi 0, %s56
      %s59 = sphi 0, %s58
      %s73 = sphi 0, %s59
      %s77 = sphi 0, %s77
      %s79 = sphi 0, %s77
      %s80 = sphi 0, %s79
      %s94 = sphi 0, %s80
      %s98 = sphi 0, %s98
      %s100 = sphi 0, %s98
      %s101 = sphi 0, %s100
      %s115 = sphi 0, %s101
      %s119 = sphi 0, %s119
      %s121 = sphi 0, %s119
      %s122 = sphi 0, %s121
      %s136 = sphi 0, %s122
      %s140 = sphi 0, %s140
      %s142 = sphi 0, %s140
      %s143 = sphi 0, %s142
      %s157 = sphi 0, %s143
      %s161 = sphi 0, %s161
      %s163 = sphi 0, %s161
      %s164 = sphi 0, %s163
      %s178 = sphi 0, %s164
      %s182 = sphi 0, %s182
      %s184 = sphi 0, %s182
      %s185 = sphi 0, %s184
      %s199 = sphi 0, %s185
      %s205 = sphi 0, %s207
      %s208 = sphi 0, %s205
      %s209 = sphi 0, %s208
      %s225 = sphi 0, %s209
      %s229 = sphi 0, %s229
      %s231 = sphi 0, %s229
      %s232 = sphi 0, %s231
      %s246 = sphi 0, %s232
    $region4: #{tpu_custom_call.1} parent=1 // loop_header_branch
      %25 = sbr.rel (%p23) target = $region8
    $region5: #{tpu_custom_call.1} parent=1 // loop_body
      %s27 = ssub.s32 %s22, 1
      %s28 = ssub.s32 %s22, 2
      %s29 = sadd.s32 %s22, 1
      %s30 = ssub.s32 %s22, %s29
      %p31 = scmp.eq.s32.totalorder %s30, 0
      %s33 = sadd.s32 %s32, 1
      %s34 = scalar_select %p31, %s32, %s33
      %p37 = pneg %p31
      %p38 = scmp.eq.s32.totalorder %s22, 7
      %p39 = por %p37, %p38
      %p40 = scmp.ne.s32.totalorder %s32, %s35
      %p41 = scmp.eq.s32.totalorder %s22, 0
      %p42 = por %p40, %p41
      %p43 = scmp.ne.s32.totalorder %s32, %s35
      %p44 = scmp.eq.s32.totalorder %s27, 7
      %p45 = por %p43, %p44
      %p46 = scmp.ne.s32.totalorder %s35, %s36
      %p47 = scmp.eq.s32.totalorder %s27, 0
      %p48 = por %p46, %p47
      %p49 = scmp.ne.s32.totalorder %s35, %s36
      %p50 = scmp.eq.s32.totalorder %s28, 7
      %p51 = por %p49, %p50
      %p53 = scmp.ne.s32.totalorder %s36, %s52
      %p54 = scmp.eq.s32.totalorder %s28, 0
      %p55 = por %p53, %p54
      %s57 = sadd.s32 %s56, 1
      %p60 = scmp.eq.s32.totalorder %s22, 7
      %p61 = scmp.ne.s32.totalorder %s56, %s58
      %p62 = scmp.eq.s32.totalorder %s22, 0
      %p63 = por %p61, %p62
      %p64 = scmp.ne.s32.totalorder %s56, %s58
      %p65 = scmp.eq.s32.totalorder %s27, 7
      %p66 = por %p64, %p65
      %p67 = scmp.ne.s32.totalorder %s58, %s59
      %p68 = scmp.eq.s32.totalorder %s27, 0
      %p69 = por %p67, %p68
      %p70 = scmp.ne.s32.totalorder %s58, %s59
      %p71 = scmp.eq.s32.totalorder %s28, 7
      %p72 = por %p70, %p71
      %p74 = scmp.ne.s32.totalorder %s59, %s73
      %p75 = scmp.eq.s32.totalorder %s28, 0
      %p76 = por %p74, %p75
      %s78 = sadd.s32 %s77, 1
      %p81 = scmp.eq.s32.totalorder %s22, 7
      %p82 = scmp.ne.s32.totalorder %s77, %s79
      %p83 = scmp.eq.s32.totalorder %s22, 0
      %p84 = por %p82, %p83
      %p85 = scmp.ne.s32.totalorder %s77, %s79
      %p86 = scmp.eq.s32.totalorder %s27, 7
      %p87 = por %p85, %p86
      %p88 = scmp.ne.s32.totalorder %s79, %s80
      %p89 = scmp.eq.s32.totalorder %s27, 0
      %p90 = por %p88, %p89
      %p91 = scmp.ne.s32.totalorder %s79, %s80
      %p92 = scmp.eq.s32.totalorder %s28, 7
      %p93 = por %p91, %p92
      %p95 = scmp.ne.s32.totalorder %s80, %s94
      %p96 = scmp.eq.s32.totalorder %s28, 0
      %p97 = por %p95, %p96
      %s99 = sadd.s32 %s98, 1
      %p102 = scmp.eq.s32.totalorder %s22, 7
      %p103 = scmp.ne.s32.totalorder %s98, %s100
      %p104 = scmp.eq.s32.totalorder %s22, 0
      %p105 = por %p103, %p104
      %p106 = scmp.ne.s32.totalorder %s98, %s100
      %p107 = scmp.eq.s32.totalorder %s27, 7
      %p108 = por %p106, %p107
      %p109 = scmp.ne.s32.totalorder %s100, %s101
      %p110 = scmp.eq.s32.totalorder %s27, 0
      %p111 = por %p109, %p110
      %p112 = scmp.ne.s32.totalorder %s100, %s101
      %p113 = scmp.eq.s32.totalorder %s28, 7
      %p114 = por %p112, %p113
      %p116 = scmp.ne.s32.totalorder %s101, %s115
      %p117 = scmp.eq.s32.totalorder %s28, 0
      %p118 = por %p116, %p117
      %s120 = sadd.s32 %s119, 1
      %p123 = scmp.eq.s32.totalorder %s22, 7
      %p124 = scmp.ne.s32.totalorder %s119, %s121
      %p125 = scmp.eq.s32.totalorder %s22, 0
      %p126 = por %p124, %p125
      %p127 = scmp.ne.s32.totalorder %s119, %s121
      %p128 = scmp.eq.s32.totalorder %s27, 7
      %p129 = por %p127, %p128
      %p130 = scmp.ne.s32.totalorder %s121, %s122
      %p131 = scmp.eq.s32.totalorder %s27, 0
      %p132 = por %p130, %p131
      %p133 = scmp.ne.s32.totalorder %s121, %s122
      %p134 = scmp.eq.s32.totalorder %s28, 7
      %p135 = por %p133, %p134
      %p137 = scmp.ne.s32.totalorder %s122, %s136
      %p138 = scmp.eq.s32.totalorder %s28, 0
      %p139 = por %p137, %p138
      %s141 = sadd.s32 %s140, 1
      %p144 = scmp.eq.s32.totalorder %s22, 7
      %p145 = scmp.ne.s32.totalorder %s140, %s142
      %p146 = scmp.eq.s32.totalorder %s22, 0
      %p147 = por %p145, %p146
      %p148 = scmp.ne.s32.totalorder %s140, %s142
      %p149 = scmp.eq.s32.totalorder %s27, 7
      %p150 = por %p148, %p149
      %p151 = scmp.ne.s32.totalorder %s142, %s143
      %p152 = scmp.eq.s32.totalorder %s27, 0
      %p153 = por %p151, %p152
      %p154 = scmp.ne.s32.totalorder %s142, %s143
      %p155 = scmp.eq.s32.totalorder %s28, 7
      %p156 = por %p154, %p155
      %p158 = scmp.ne.s32.totalorder %s143, %s157
      %p159 = scmp.eq.s32.totalorder %s28, 0
      %p160 = por %p158, %p159
      %s162 = sadd.s32 %s161, 1
      %p165 = scmp.eq.s32.totalorder %s22, 7
      %p166 = scmp.ne.s32.totalorder %s161, %s163
      %p167 = scmp.eq.s32.totalorder %s22, 0
      %p168 = por %p166, %p167
      %p169 = scmp.ne.s32.totalorder %s161, %s163
      %p170 = scmp.eq.s32.totalorder %s27, 7
      %p171 = por %p169, %p170
      %p172 = scmp.ne.s32.totalorder %s163, %s164
      %p173 = scmp.eq.s32.totalorder %s27, 0
      %p174 = por %p172, %p173
      %p175 = scmp.ne.s32.totalorder %s163, %s164
      %p176 = scmp.eq.s32.totalorder %s28, 7
      %p177 = por %p175, %p176
      %p179 = scmp.ne.s32.totalorder %s164, %s178
      %p180 = scmp.eq.s32.totalorder %s28, 0
      %p181 = por %p179, %p180
      %s183 = sadd.s32 %s182, 1
      %p186 = scmp.eq.s32.totalorder %s22, 7
      %p187 = scmp.ne.s32.totalorder %s182, %s184
      %p188 = scmp.eq.s32.totalorder %s22, 0
      %p189 = por %p187, %p188
      %p190 = scmp.ne.s32.totalorder %s182, %s184
      %p191 = scmp.eq.s32.totalorder %s27, 7
      %p192 = por %p190, %p191
      %p193 = scmp.ne.s32.totalorder %s184, %s185
      %p194 = scmp.eq.s32.totalorder %s27, 0
      %p195 = por %p193, %p194
      %p196 = scmp.ne.s32.totalorder %s184, %s185
      %p197 = scmp.eq.s32.totalorder %s28, 7
      %p198 = por %p196, %p197
      %p200 = scmp.ne.s32.totalorder %s185, %s199
      %p201 = scmp.eq.s32.totalorder %s28, 0
      %p202 = por %p200, %p201
      %s203 = ssub.s32 %s22, %s29
      %p204 = scmp.eq.s32.totalorder %s203, 0
      %s206 = sadd.s32 %s205, 1
      %s207 = scalar_select %p204, %s205, %s206
      %p210 = pneg %p204
      %p211 = scmp.eq.s32.totalorder %s22, 7
      %p212 = por %p210, %p211
      %p213 = scmp.ne.s32.totalorder %s205, %s208
      %p214 = scmp.eq.s32.totalorder %s22, 0
      %p215 = por %p213, %p214
      %p216 = scmp.ne.s32.totalorder %s205, %s208
      %p217 = scmp.eq.s32.totalorder %s27, 7
      %p218 = por %p216, %p217
      %p219 = scmp.ne.s32.totalorder %s208, %s209
      %p220 = scmp.eq.s32.totalorder %s27, 0
      %p221 = por %p219, %p220
      %p222 = scmp.ne.s32.totalorder %s208, %s209
      %p223 = scmp.eq.s32.totalorder %s28, 7
      %p224 = por %p222, %p223
      %p226 = scmp.ne.s32.totalorder %s209, %s225
      %p227 = scmp.eq.s32.totalorder %s28, 0
      %p228 = por %p226, %p227
      %s230 = sadd.s32 %s229, 1
      %p233 = scmp.eq.s32.totalorder %s22, 7
      %p234 = scmp.ne.s32.totalorder %s229, %s231
      %p235 = scmp.eq.s32.totalorder %s22, 0
      %p236 = por %p234, %p235
      %p237 = scmp.ne.s32.totalorder %s229, %s231
      %p238 = scmp.eq.s32.totalorder %s27, 7
      %p239 = por %p237, %p238
      %p240 = scmp.ne.s32.totalorder %s231, %s232
      %p241 = scmp.eq.s32.totalorder %s27, 0
      %p242 = por %p240, %p241
      %p243 = scmp.ne.s32.totalorder %s231, %s232
      %p244 = scmp.eq.s32.totalorder %s28, 7
      %p245 = por %p243, %p244
      %p247 = scmp.ne.s32.totalorder %s232, %s246
      %p248 = scmp.eq.s32.totalorder %s28, 0
      %p249 = por %p247, %p248
      %p250 = scmp.le.s32.totalorder 1, %s22
      %p251 = scmp.lt.s32.totalorder %s22, 9
      %p252 = pnand %p250, %p251
      %p253 = pneg %p252
      // Predicated region
      $region9: #{tpu_custom_call.1} parent=5 // pred_check
        _
      $region10: #{tpu_custom_call.1} parent=5 // pred_check_branch
        %255 = sbr.rel (%p252) target = $region12
      $region11: #{tpu_custom_call.1} parent=5 // pred_region
        %s256 = ssub.s32 %s22, 1
        // Predicated region
        $region13: #{tpu_custom_call.1} parent=11 // pred_check
          %p257 = pneg %p69
        $region14: #{tpu_custom_call.1} parent=11 // pred_check_branch
          %259 = sbr.rel (%p257) target = $region16
        $region15: #{tpu_custom_call.1} parent=11 // pred_region
          _
        $region16: #{tpu_custom_call.1} parent=11 // pred_fallthru
          _
        // Predicated region
        $region17: #{tpu_custom_call.1} parent=11 // pred_check
          %p260 = pneg %p90
        $region18: #{tpu_custom_call.1} parent=11 // pred_check_branch
          %262 = sbr.rel (%p260) target = $region20
        $region19: #{tpu_custom_call.1} parent=11 // pred_region
          %s264 = ssub.s32 512, 512
          %265 = vsyncadd [#allocation4], %s264
          %s266 = sshll.u32 [#allocation3], 4
          %s267 = int_to_ptr.vmem [resolvable:$true] %s266
          %272 = dma.hbm_to_vmem [thread:$0]  %s2, 512, %s267, [#allocation4], 128, 128, 8
        $region20: #{tpu_custom_call.1} parent=11 // pred_fallthru
          _
        // Predicated region
        $region21: #{tpu_custom_call.1} parent=11 // pred_check
          %p273 = pneg %p111
        $region22: #{tpu_custom_call.1} parent=11 // pred_check_branch
          %275 = sbr.rel (%p273) target = $region24
        $region23: #{tpu_custom_call.1} parent=11 // pred_region
          %s277 = ssub.s32 4096, 4096
          %278 = vsyncadd [#allocation7], %s277
          %s279 = sshll.u32 [#allocation6], 4
          %s280 = int_to_ptr.vmem [resolvable:$true] %s279
          %285 = dma.hbm_to_vmem [thread:$0]  %s3, 4096, %s280, [#allocation7], 256, 256, 16
        $region24: #{tpu_custom_call.1} parent=11 // pred_fallthru
          _
        // Predicated region
        $region25: #{tpu_custom_call.1} parent=11 // pred_check
          %p286 = pneg %p132
        $region26: #{tpu_custom_call.1} parent=11 // pred_check_branch
          %288 = sbr.rel (%p286) target = $region28
        $region27: #{tpu_custom_call.1} parent=11 // pred_region
          _
        $region28: #{tpu_custom_call.1} parent=11 // pred_fallthru
          _
        // Predicated region
        $region29: #{tpu_custom_call.1} parent=11 // pred_check
          %p289 = pneg %p153
        $region30: #{tpu_custom_call.1} parent=11 // pred_check_branch
          %291 = sbr.rel (%p289) target = $region32
        $region31: #{tpu_custom_call.1} parent=11 // pred_region
          _
        $region32: #{tpu_custom_call.1} parent=11 // pred_fallthru
          _
        // Predicated region
        $region33: #{tpu_custom_call.1} parent=11 // pred_check
          %p292 = pneg %p174
        $region34: #{tpu_custom_call.1} parent=11 // pred_check_branch
          %294 = sbr.rel (%p292) target = $region36
        $region35: #{tpu_custom_call.1} parent=11 // pred_region
          _
        $region36: #{tpu_custom_call.1} parent=11 // pred_fallthru
          _
        // Predicated region
        $region37: #{tpu_custom_call.1} parent=11 // pred_check
          %p295 = pneg %p195
        $region38: #{tpu_custom_call.1} parent=11 // pred_check_branch
          %297 = sbr.rel (%p295) target = $region40
        $region39: #{tpu_custom_call.1} parent=11 // pred_region
          %s299 = ssub.s32 128, 128
          %300 = vsyncadd [#allocation7], %s299
          %s302 = sshll.u32 [#allocation8], 4
          %s303 = int_to_ptr.vmem [resolvable:$true] %s302
          %305 = dma.hbm_to_vmem [thread:$0]  %s7, 128, %s303, [#allocation7]
        $region40: #{tpu_custom_call.1} parent=11 // pred_fallthru
          _
      $region12: #{tpu_custom_call.1} parent=5 // pred_fallthru
        _
      %p306 = scmp.lt.s32.totalorder %s22, 8
      // Predicated region
      $region41: #{tpu_custom_call.1} parent=5 // pred_check
        %p307 = pneg %p306
      $region42: #{tpu_custom_call.1} parent=5 // pred_check_branch
        %309 = sbr.rel (%p307) target = $region44
      $region43: #{tpu_custom_call.1} parent=5 // pred_region
        // Predicated region
        $region45: #{tpu_custom_call.1} parent=43 // pred_check
          %p310 = pneg %p42
        $region46: #{tpu_custom_call.1} parent=43 // pred_check_branch
          %312 = sbr.rel (%p310) target = $region48
        $region47: #{tpu_custom_call.1} parent=43 // pred_region
          %p313 = scmp.lt.s32.totalorder %s22, 7
          %s314 = scalar_select %p313, %s22, 7
          %s315 = smul.addr %s314, 8
          %s316 = scalar_lea.vmem %s0, %s315
        $region48: #{tpu_custom_call.1} parent=43 // pred_fallthru
          _
      $region44: #{tpu_custom_call.1} parent=5 // pred_fallthru
        _
      %p317 = scmp.le.s32.totalorder 1, %s22
      %p318 = scmp.lt.s32.totalorder %s22, 9
      %p319 = pnand %p317, %p318
      %p320 = pneg %p319
      // Predicated region
      $region49: #{tpu_custom_call.1} parent=5 // pred_check
        _
      $region50: #{tpu_custom_call.1} parent=5 // pred_check_branch
        %322 = sbr.rel (%p319) target = $region52
      $region51: #{tpu_custom_call.1} parent=5 // pred_region
        %s323 = ssub.s32 %s22, 1
        // Predicated region
        $region53: #{tpu_custom_call.1} parent=51 // pred_check
          %p324 = pneg %p90
        $region54: #{tpu_custom_call.1} parent=51 // pred_check_branch
          %326 = sbr.rel (%p324) target = $region56
        $region55: #{tpu_custom_call.1} parent=51 // pred_region
          %327 = dma.done [#allocation4], 512
        $region56: #{tpu_custom_call.1} parent=51 // pred_fallthru
          _
        // Predicated region
        $region57: #{tpu_custom_call.1} parent=51 // pred_check
          %p328 = pneg %p111
        $region58: #{tpu_custom_call.1} parent=51 // pred_check_branch
          %330 = sbr.rel (%p328) target = $region60
        $region59: #{tpu_custom_call.1} parent=51 // pred_region
          %331 = dma.done [#allocation7], 4096
        $region60: #{tpu_custom_call.1} parent=51 // pred_fallthru
          _
        // Predicated region
        $region61: #{tpu_custom_call.1} parent=51 // pred_check
          %p332 = pneg %p195
        $region62: #{tpu_custom_call.1} parent=51 // pred_check_branch
          %334 = sbr.rel (%p332) target = $region64
        $region63: #{tpu_custom_call.1} parent=51 // pred_region
          %335 = dma.done [#allocation7], 128
        $region64: #{tpu_custom_call.1} parent=51 // pred_fallthru
          _
        %p336 = scmp.lt.s32.totalorder %s27, 7
        %s337 = scalar_select %p336, %s27, 7
        %s338 = smul.addr %s337, 8
        %s339 = scalar_lea.vmem %s0, %s338
        %p340 = pneg %p48
        %p341 = pneg %p45
        %p342 = pneg %p69
        %p343 = pneg %p66
        %p344 = pneg %p90
        %p345 = pneg %p87
        %p346 = pneg %p111
        %p347 = pneg %p108
        %p348 = pneg %p132
        %p349 = pneg %p129
        %p350 = pneg %p153
        %p351 = pneg %p150
        %p352 = pneg %p174
        %p353 = pneg %p171
        %p354 = pneg %p195
        %p355 = pneg %p192
        %p356 = pneg %p221
        %p357 = pneg %p218
        %s358 = sand.u32 %s208, 1
        %s359 = scalar_lea.sflag [#allocation5], %s358
        %s360 = sand.u32 %s208, 1
        %s361 = smul.addr %s360, 8
        %s362 = scalar_lea.vmem [#allocation9], %s361
        %p363 = pneg %p242
        %p364 = pneg %p239
        %p365 = scmp.lt.s32.totalorder %s27, 7
        %s366 = scalar_select %p365, %s27, 7
        %s367 = smul.addr %s366, 8
        %s368 = scalar_lea.vmem %s0, %s367
        %p369 = scmp.eq.s32.totalorder %s27, 0
        // Predicated region
        $region65: #{tpu_custom_call.1} parent=51 // pred_check
          %p370 = pneg %p369
        $region66: #{tpu_custom_call.1} parent=51 // pred_check_branch
          %372 = sbr.rel (%p370) target = $region68
        $region67: #{tpu_custom_call.1} parent=51 // pred_region
          %v373 = vld [vmem:[#allocation8] sm:$0xff]
          %374 = vst [vmem:[#allocation2] sm:$0xff] %v373
        $region68: #{tpu_custom_call.1} parent=51 // pred_fallthru
          _
        %v375 = vld [vmem:[#allocation2] sm:$0xff]
        %v376 = vld [vmem:[%s368] sm:$0xff]
        %v377 = vld [vmem:[#allocation6] sm:$0xff]
        %v378 = vld [vmem:[#allocation6 + $0x8] sm:$0xff]
        %v379 = vld [vmem:[#allocation6 + $0x10] sm:$0xff]
        %v380 = vld [vmem:[#allocation6 + $0x18] sm:$0xff]
        %v381 = vld [vmem:[#allocation6 + $0x20] sm:$0xff]
        %v382 = vld [vmem:[#allocation6 + $0x28] sm:$0xff]
        %v383 = vld [vmem:[#allocation6 + $0x30] sm:$0xff]
        %v384 = vld [vmem:[#allocation6 + $0x38] sm:$0xff]
        %v385 = vld [vmem:[#allocation6 + $0x40] sm:$0xff]
        %v386 = vld [vmem:[#allocation6 + $0x48] sm:$0xff]
        %v387 = vld [vmem:[#allocation6 + $0x50] sm:$0xff]
        %v388 = vld [vmem:[#allocation6 + $0x58] sm:$0xff]
        %v389 = vld [vmem:[#allocation6 + $0x60] sm:$0xff]
        %v390 = vld [vmem:[#allocation6 + $0x68] sm:$0xff]
        %v391 = vld [vmem:[#allocation6 + $0x70] sm:$0xff]
        %v392 = vld [vmem:[#allocation6 + $0x78] sm:$0xff]
        %v393 = vld [vmem:[#allocation6 + $0x80] sm:$0xff]
        %v394 = vld [vmem:[#allocation6 + $0x88] sm:$0xff]
        %v395 = vld [vmem:[#allocation6 + $0x90] sm:$0xff]
        %v396 = vld [vmem:[#allocation6 + $0x98] sm:$0xff]
        %v397 = vld [vmem:[#allocation6 + $0xa0] sm:$0xff]
        %v398 = vld [vmem:[#allocation6 + $0xa8] sm:$0xff]
        %v399 = vld [vmem:[#allocation6 + $0xb0] sm:$0xff]
        %v400 = vld [vmem:[#allocation6 + $0xb8] sm:$0xff]
        %v401 = vld [vmem:[#allocation6 + $0xc0] sm:$0xff]
        %v402 = vld [vmem:[#allocation6 + $0xc8] sm:$0xff]
        %v403 = vld [vmem:[#allocation6 + $0xd0] sm:$0xff]
        %v404 = vld [vmem:[#allocation6 + $0xd8] sm:$0xff]
        %v405 = vld [vmem:[#allocation6 + $0xe0] sm:$0xff]
        %v406 = vld [vmem:[#allocation6 + $0xe8] sm:$0xff]
        %v407 = vld [vmem:[#allocation6 + $0xf0] sm:$0xff]
        %v408 = vld [vmem:[#allocation6 + $0xf8] sm:$0xff]
        %v409 = vld [vmem:[%s4] sm:$0x3]
        %v411 = vlaneseq
        %v412 = vshrl.u32 %v411, 7
        %v413 = vsub.s32 0, %v412
        %v414 = vrot.slane %v409, %v413
        %v415 = vlaneseq
        %v416 = vshrl.u32 %v415, 7
        %v417 = vsub.s32 1, %v416
        %v418 = vrot.slane %v409, %v417
        %421 = vmatprep.subr.mxu0 %v378
        %422 = vmatpush1.msra.mxu0 %v377
        %423 = vmatprep.subr.mxu0 %v380
        %424 = vmatpush1.msra.mxu0 %v379
        %425 = vmatprep.subr.mxu0 %v382
        %426 = vmatpush1.msra.mxu0 %v381
        %427 = vmatprep.subr.mxu0 %v384
        %428 = vmatpush1.msra.mxu0 %v383
        %429 = vmatprep.subr.mxu0 %v386
        %430 = vmatpush1.msra.mxu0 %v385
        %431 = vmatprep.subr.mxu0 %v388
        %432 = vmatpush1.msra.mxu0 %v387
        %433 = vmatprep.subr.mxu0 %v390
        %434 = vmatpush1.msra.mxu0 %v389
        %435 = vmatprep.subr.mxu0 %v392
        %436 = vmatpush1.msra.mxu0 %v391
        %437 = vmatprep.subr.mxu0 %v394
        %438 = vmatpush1.msra.mxu0 %v393
        %439 = vmatprep.subr.mxu0 %v396
        %440 = vmatpush1.msra.mxu0 %v395
        %441 = vmatprep.subr.mxu0 %v398
        %442 = vmatpush1.msra.mxu0 %v397
        %443 = vmatprep.subr.mxu0 %v400
        %444 = vmatpush1.msra.mxu0 %v399
        %445 = vmatprep.subr.mxu0 %v402
        %446 = vmatpush1.msra.mxu0 %v401
        %447 = vmatprep.subr.mxu0 %v404
        %448 = vmatpush1.msra.mxu0 %v403
        %449 = vmatprep.subr.mxu0 %v406
        %450 = vmatpush1.msra.mxu0 %v405
        %451 = vmatprep.subr.mxu0 %v408
        %452 = vmatpush1.msra.mxu0 %v407
        %453 = vmatprep.subr.mxu0 0.0
        %454 = vmatpush1.msra.mxu0 0.0
        %455 = vmatprep.subr.mxu0 0.0
        %456 = vmatpush1.msra.mxu0 0.0
        %457 = vmatprep.subr.mxu0 0.0
        %458 = vmatpush1.msra.mxu0 0.0
        %459 = vmatprep.subr.mxu0 0.0
        %460 = vmatpush1.msra.mxu0 0.0
        %461 = vmatprep.subr.mxu0 0.0
        %462 = vmatpush1.msra.mxu0 0.0
        %463 = vmatprep.subr.mxu0 0.0
        %464 = vmatpush1.msra.mxu0 0.0
        %465 = vmatprep.subr.mxu0 0.0
        %466 = vmatpush1.msra.mxu0 0.0
        %467 = vmatprep.subr.mxu0 0.0
        %468 = vmatpush1.msra.mxu0 0.0
        %469 = vmatprep.subr.mxu0 0.0
        %470 = vmatpush1.msra.mxu0 0.0
        %471 = vmatprep.subr.mxu0 0.0
        %472 = vmatpush1.msra.mxu0 0.0
        %473 = vmatprep.subr.mxu0 0.0
        %474 = vmatpush1.msra.mxu0 0.0
        %475 = vmatprep.subr.mxu0 0.0
        %476 = vmatpush1.msra.mxu0 0.0
        %477 = vmatprep.subr.mxu0 0.0
        %478 = vmatpush1.msra.mxu0 0.0
        %479 = vmatprep.subr.mxu0 0.0
        %480 = vmatpush1.msra.mxu0 0.0
        %481 = vmatprep.subr.mxu0 0.0
        %482 = vmatpush1.msra.mxu0 0.0
        %483 = vmatprep.subr.mxu0 0.0
        %484 = vmatpush1.msra.mxu0 0.0
        %485 = vmatprep.mubr.f32.mxu0 0.0
        %486 = vmatmul.mubr.f32.gmra.mrb[0].mxu0 %v375
        %v487 = vpop.f32.mrb[0].mxu0
        %v488 = vadd.f32 %v414, %v487
        %v489 = vpop.f32.mrb[0].mxu0
        %v490 = vadd.f32 %v418, %v489
        %491 = vdwg.mxu0
        %v492 = vld [vmem:[%s1] sm:$0xff]
        %v493 = vld [vmem:[%s1 + $0x8] sm:$0xff]
        %vm494 = vcmask 130048
        %v496 = vsel %vm494, %v376, 0
        %498 = vmatprep.subr.mxu0 0.0
        %499 = vmatpush1.msra.mxu0 %v492
        %500 = vmatprep.subr.mxu0 0.0
        %501 = vmatpush1.msra.mxu0 %v493
        %502 = vmatprep.subr.mxu0 0.0
        %503 = vmatpush1.msra.mxu0 0.0
        %504 = vmatprep.subr.mxu0 0.0
        %505 = vmatpush1.msra.mxu0 0.0
        %506 = vmatprep.subr.mxu0 0.0
        %507 = vmatpush1.msra.mxu0 0.0
        %508 = vmatprep.subr.mxu0 0.0
        %509 = vmatpush1.msra.mxu0 0.0
        %510 = vmatprep.subr.mxu0 0.0
        %511 = vmatpush1.msra.mxu0 0.0
        %512 = vmatprep.subr.mxu0 0.0
        %513 = vmatpush1.msra.mxu0 0.0
        %514 = vmatprep.subr.mxu0 0.0
        %515 = vmatpush1.msra.mxu0 0.0
        %516 = vmatprep.subr.mxu0 0.0
        %517 = vmatpush1.msra.mxu0 0.0
        %518 = vmatprep.subr.mxu0 0.0
        %519 = vmatpush1.msra.mxu0 0.0
        %520 = vmatprep.subr.mxu0 0.0
        %521 = vmatpush1.msra.mxu0 0.0
        %522 = vmatprep.subr.mxu0 0.0
        %523 = vmatpush1.msra.mxu0 0.0
        %524 = vmatprep.subr.mxu0 0.0
        %525 = vmatpush1.msra.mxu0 0.0
        %526 = vmatprep.subr.mxu0 0.0
        %527 = vmatpush1.msra.mxu0 0.0
        %528 = vmatprep.subr.mxu0 0.0
        %529 = vmatpush1.msra.mxu0 0.0
        %530 = vmatprep.subr.mxu0 0.0
        %531 = vmatpush1.msra.mxu0 0.0
        %532 = vmatprep.subr.mxu0 0.0
        %533 = vmatpush1.msra.mxu0 0.0
        %534 = vmatprep.subr.mxu0 0.0
        %535 = vmatpush1.msra.mxu0 0.0
        %536 = vmatprep.subr.mxu0 0.0
        %537 = vmatpush1.msra.mxu0 0.0
        %538 = vmatprep.subr.mxu0 0.0
        %539 = vmatpush1.msra.mxu0 0.0
        %540 = vmatprep.subr.mxu0 0.0
        %541 = vmatpush1.msra.mxu0 0.0
        %542 = vmatprep.subr.mxu0 0.0
        %543 = vmatpush1.msra.mxu0 0.0
        %544 = vmatprep.subr.mxu0 0.0
        %545 = vmatpush1.msra.mxu0 0.0
        %546 = vmatprep.subr.mxu0 0.0
        %547 = vmatpush1.msra.mxu0 0.0
        %548 = vmatprep.subr.mxu0 0.0
        %549 = vmatpush1.msra.mxu0 0.0
        %550 = vmatprep.subr.mxu0 0.0
        %551 = vmatpush1.msra.mxu0 0.0
        %552 = vmatprep.subr.mxu0 0.0
        %553 = vmatpush1.msra.mxu0 0.0
        %554 = vmatprep.subr.mxu0 0.0
        %555 = vmatpush1.msra.mxu0 0.0
        %556 = vmatprep.subr.mxu0 0.0
        %557 = vmatpush1.msra.mxu0 0.0
        %558 = vmatprep.subr.mxu0 0.0
        %559 = vmatpush1.msra.mxu0 0.0
        %560 = vmatprep.subr.mxu0 0.0
        %561 = vmatpush1.msra.mxu0 0.0
        %562 = vmatprep.mubr.f32.mxu0 0.0
        %563 = vmatmul.mubr.f32.gmra.mrb[0].mxu0 %v496
        %v564 = vpop.f32.mrb[0].mxu0
        %v565 = vadd.f32 %v488, %v564
        %v566 = vpop.f32.mrb[0].mxu0
        %567 = vdwg.mxu0
        %v568 = vxor.u32 %v565, 2147483648
        %v569 = vmul.f32 %v568, 1.442695
        %v570 = vpow.pop %v569
        %v571 = vadd.f32 %v570, 1.0
        %v572 = vrcp.pop %v571
        %v573 = vmul.f32 1.0, %v572
        %v574 = vtanh.pop %v565
        %576 = vrot.lane.b32.xlu0 %v375, 96
        %v577 = vpop.permute.xlu0 %576
        %v579 = vmul.f32 %v573, %v577
        %581 = vrot.lane.b32.xlu0 %v574, 64
        %v582 = vpop.permute.xlu0 %581
        %v584 = vmul.f32 %v573, %v582
        %586 = vrot.lane.b32.xlu0 %v584, 32
        %v587 = vpop.permute.xlu0 %586
        %v589 = vadd.f32 %v579, %v587
        %v590 = vtanh.pop %v589
        %592 = vrot.lane.b32.xlu0 %v590, 64
        %v593 = vpop.permute.xlu0 %592
        %v595 = vmul.f32 %v573, %v593
        %597 = vrot.lane.b32.xlu0 %v595, 32
        %v598 = vpop.permute.xlu0 %597
        %vm600 = vcmask 261120
        %601 = vst.msk [vmem:[#allocation2] sm:$0xff] %vm600, %v598
        %603 = vrot.lane.b32.xlu0 %v589, 32
        %v604 = vpop.permute.xlu0 %603
        %vm606 = vcmask 785920
        %607 = vst.msk [vmem:[#allocation2] sm:$0xff] %vm606, %v604
        %v608 = vld [vmem:[#allocation3] sm:$0xff]
        %v609 = vld [vmem:[#allocation3 + $0x8] sm:$0xff]
        %v610 = vld [vmem:[#allocation3 + $0x10] sm:$0xff]
        %v611 = vld [vmem:[#allocation3 + $0x18] sm:$0xff]
        %v612 = vsel %vm600, %v598, 0
        %614 = vmatprep.subr.mxu0 0.0
        %615 = vmatpush1.msra.mxu0 %v608
        %616 = vmatprep.subr.mxu0 0.0
        %617 = vmatpush1.msra.mxu0 %v609
        %618 = vmatprep.subr.mxu0 0.0
        %619 = vmatpush1.msra.mxu0 %v610
        %620 = vmatprep.subr.mxu0 0.0
        %621 = vmatpush1.msra.mxu0 %v611
        %622 = vmatprep.subr.mxu0 0.0
        %623 = vmatpush1.msra.mxu0 0.0
        %624 = vmatprep.subr.mxu0 0.0
        %625 = vmatpush1.msra.mxu0 0.0
        %626 = vmatprep.subr.mxu0 0.0
        %627 = vmatpush1.msra.mxu0 0.0
        %628 = vmatprep.subr.mxu0 0.0
        %629 = vmatpush1.msra.mxu0 0.0
        %630 = vmatprep.subr.mxu0 0.0
        %631 = vmatpush1.msra.mxu0 0.0
        %632 = vmatprep.subr.mxu0 0.0
        %633 = vmatpush1.msra.mxu0 0.0
        %634 = vmatprep.subr.mxu0 0.0
        %635 = vmatpush1.msra.mxu0 0.0
        %636 = vmatprep.subr.mxu0 0.0
        %637 = vmatpush1.msra.mxu0 0.0
        %638 = vmatprep.subr.mxu0 0.0
        %639 = vmatpush1.msra.mxu0 0.0
        %640 = vmatprep.subr.mxu0 0.0
        %641 = vmatpush1.msra.mxu0 0.0
        %642 = vmatprep.subr.mxu0 0.0
        %643 = vmatpush1.msra.mxu0 0.0
        %644 = vmatprep.subr.mxu0 0.0
        %645 = vmatpush1.msra.mxu0 0.0
        %646 = vmatprep.subr.mxu0 0.0
        %647 = vmatpush1.msra.mxu0 0.0
        %648 = vmatprep.subr.mxu0 0.0
        %649 = vmatpush1.msra.mxu0 0.0
        %650 = vmatprep.subr.mxu0 0.0
        %651 = vmatpush1.msra.mxu0 0.0
        %652 = vmatprep.subr.mxu0 0.0
        %653 = vmatpush1.msra.mxu0 0.0
        %654 = vmatprep.subr.mxu0 0.0
        %655 = vmatpush1.msra.mxu0 0.0
        %656 = vmatprep.subr.mxu0 0.0
        %657 = vmatpush1.msra.mxu0 0.0
        %658 = vmatprep.subr.mxu0 0.0
        %659 = vmatpush1.msra.mxu0 0.0
        %660 = vmatprep.subr.mxu0 0.0
        %661 = vmatpush1.msra.mxu0 0.0
        %662 = vmatprep.subr.mxu0 0.0
        %663 = vmatpush1.msra.mxu0 0.0
        %664 = vmatprep.subr.mxu0 0.0
        %665 = vmatpush1.msra.mxu0 0.0
        %666 = vmatprep.subr.mxu0 0.0
        %667 = vmatpush1.msra.mxu0 0.0
        %668 = vmatprep.subr.mxu0 0.0
        %669 = vmatpush1.msra.mxu0 0.0
        %670 = vmatprep.subr.mxu0 0.0
        %671 = vmatpush1.msra.mxu0 0.0
        %672 = vmatprep.subr.mxu0 0.0
        %673 = vmatpush1.msra.mxu0 0.0
        %674 = vmatprep.subr.mxu0 0.0
        %675 = vmatpush1.msra.mxu0 0.0
        %676 = vmatprep.subr.mxu0 0.0
        %677 = vmatpush1.msra.mxu0 0.0
        %678 = vmatprep.mubr.f32.mxu0 0.0
        %679 = vmatmul.mubr.f32.gmra.mrb[0].mxu0 %v612
        %v680 = vpop.f32.mrb[0].mxu0
        %v681 = vadd.f32 %v490, %v680
        %v682 = vpop.f32.mrb[0].mxu0
        %683 = vdwg.mxu0
        %v684 = vxor.u32 %v681, 2147483648
        %v685 = vmul.f32 %v684, 1.442695
        %v686 = vpow.pop %v685
        %v687 = vadd.f32 %v686, 1.0
        %v688 = vrcp.pop %v687
        %v689 = vmul.f32 1.0, %v688
        %v690 = vtanh.pop %v681
        %691 = vrot.lane.b32.xlu0 %v375, 64
        %v692 = vpop.permute.xlu0 %691
        %v694 = vmul.f32 %v689, %v692
        %696 = vrot.lane.b32.xlu0 %v690, 64
        %v697 = vpop.permute.xlu0 %696
        %v699 = vmul.f32 %v689, %v697
        %701 = vrot.lane.b32.xlu0 %v699, 32
        %v702 = vpop.permute.xlu0 %701
        %v704 = vadd.f32 %v694, %v702
        %v705 = vtanh.pop %v704
        %707 = vrot.lane.b32.xlu0 %v705, 64
        %v708 = vpop.permute.xlu0 %707
        %v710 = vmul.f32 %v689, %v708
        %712 = vrot.lane.b32.xlu0 %v710, 64
        %v713 = vpop.permute.xlu0 %712
        %vm715 = vcmask 523520
        %716 = vst.msk [vmem:[#allocation2] sm:$0xff] %vm715, %v713
        %718 = vrot.lane.b32.xlu0 %v704, 64
        %v719 = vpop.permute.xlu0 %718
        %vm721 = vcmask 1048320
        %722 = vst.msk [vmem:[#allocation2] sm:$0xff] %vm721, %v719
        %v723 = vld [vmem:[%s5] sm:$0xff]
        %v724 = vld [vmem:[%s5 + $0x8] sm:$0xff]
        %v725 = vld [vmem:[%s5 + $0x10] sm:$0xff]
        %v726 = vld [vmem:[%s5 + $0x18] sm:$0xff]
        %v727 = vld [vmem:[%s6] sm:$0x1]
        %v729 = vlaneseq
        %v730 = vshrl.u32 %v729, 7
        %v731 = vsub.s32 0, %v730
        %v732 = vrot.slane %v727, %v731
        %734 = vrot.lane.b32.xlu0 %v710, 32
        %v735 = vpop.permute.xlu0 %734
        %v736 = vsel %vm600, %v735, 0
        %738 = vmatprep.subr.mxu0 0.0
        %739 = vmatpush1.msra.mxu0 %v723
        %740 = vmatprep.subr.mxu0 0.0
        %741 = vmatpush1.msra.mxu0 %v724
        %742 = vmatprep.subr.mxu0 0.0
        %743 = vmatpush1.msra.mxu0 %v725
        %744 = vmatprep.subr.mxu0 0.0
        %745 = vmatpush1.msra.mxu0 %v726
        %746 = vmatprep.subr.mxu0 0.0
        %747 = vmatpush1.msra.mxu0 0.0
        %748 = vmatprep.subr.mxu0 0.0
        %749 = vmatpush1.msra.mxu0 0.0
        %750 = vmatprep.subr.mxu0 0.0
        %751 = vmatpush1.msra.mxu0 0.0
        %752 = vmatprep.subr.mxu0 0.0
        %753 = vmatpush1.msra.mxu0 0.0
        %754 = vmatprep.subr.mxu0 0.0
        %755 = vmatpush1.msra.mxu0 0.0
        %756 = vmatprep.subr.mxu0 0.0
        %757 = vmatpush1.msra.mxu0 0.0
        %758 = vmatprep.subr.mxu0 0.0
        %759 = vmatpush1.msra.mxu0 0.0
        %760 = vmatprep.subr.mxu0 0.0
        %761 = vmatpush1.msra.mxu0 0.0
        %762 = vmatprep.subr.mxu0 0.0
        %763 = vmatpush1.msra.mxu0 0.0
        %764 = vmatprep.subr.mxu0 0.0
        %765 = vmatpush1.msra.mxu0 0.0
        %766 = vmatprep.subr.mxu0 0.0
        %767 = vmatpush1.msra.mxu0 0.0
        %768 = vmatprep.subr.mxu0 0.0
        %769 = vmatpush1.msra.mxu0 0.0
        %770 = vmatprep.subr.mxu0 0.0
        %771 = vmatpush1.msra.mxu0 0.0
        %772 = vmatprep.subr.mxu0 0.0
        %773 = vmatpush1.msra.mxu0 0.0
        %774 = vmatprep.subr.mxu0 0.0
        %775 = vmatpush1.msra.mxu0 0.0
        %776 = vmatprep.subr.mxu0 0.0
        %777 = vmatpush1.msra.mxu0 0.0
        %778 = vmatprep.subr.mxu0 0.0
        %779 = vmatpush1.msra.mxu0 0.0
        %780 = vmatprep.subr.mxu0 0.0
        %781 = vmatpush1.msra.mxu0 0.0
        %782 = vmatprep.subr.mxu0 0.0
        %783 = vmatpush1.msra.mxu0 0.0
        %784 = vmatprep.subr.mxu0 0.0
        %785 = vmatpush1.msra.mxu0 0.0
        %786 = vmatprep.subr.mxu0 0.0
        %787 = vmatpush1.msra.mxu0 0.0
        %788 = vmatprep.subr.mxu0 0.0
        %789 = vmatpush1.msra.mxu0 0.0
        %790 = vmatprep.subr.mxu0 0.0
        %791 = vmatpush1.msra.mxu0 0.0
        %792 = vmatprep.subr.mxu0 0.0
        %793 = vmatpush1.msra.mxu0 0.0
        %794 = vmatprep.subr.mxu0 0.0
        %795 = vmatpush1.msra.mxu0 0.0
        %796 = vmatprep.subr.mxu0 0.0
        %797 = vmatpush1.msra.mxu0 0.0
        %798 = vmatprep.subr.mxu0 0.0
        %799 = vmatpush1.msra.mxu0 0.0
        %800 = vmatprep.subr.mxu0 0.0
        %801 = vmatpush1.msra.mxu0 0.0
        %802 = vmatprep.mubr.f32.mxu0 0.0
        %803 = vmatmul.mubr.f32.gmra.mrb[0].mxu0 %v736
        %v804 = vpop.f32.mrb[0].mxu0
        %v805 = vadd.f32 %v732, %v804
        %v806 = vpop.f32.mrb[0].mxu0
        %807 = vdwg.mxu0
        %v808 = vtanh.pop %v805
        %809 = vst.msk [vmem:[%s362] sm:$0xff] %vm494, %v808
        %p810 = scmp.eq.s32.totalorder %s27, 7
        // Predicated region
        $region69: #{tpu_custom_call.1} parent=51 // pred_check
          %p811 = pneg %p810
        $region70: #{tpu_custom_call.1} parent=51 // pred_check_branch
          %813 = sbr.rel (%p811) target = $region72
        $region71: #{tpu_custom_call.1} parent=51 // pred_region
          %v814 = vld [vmem:[#allocation2] sm:$0xff]
          %815 = vst [vmem:[#allocation10] sm:$0xff] %v814
        $region72: #{tpu_custom_call.1} parent=51 // pred_fallthru
          _
        %s816 = sand.u32 %s208, 1
        %s817 = scalar_lea.sflag [#allocation5], %s816
        %s818 = sand.u32 %s208, 1
        %s819 = smul.addr %s818, 8
        %s820 = scalar_lea.vmem [#allocation9], %s819
        // Predicated region
        $region73: #{tpu_custom_call.1} parent=51 // pred_check
          %p821 = pneg %p218
        $region74: #{tpu_custom_call.1} parent=51 // pred_check_branch
          %823 = sbr.rel (%p821) target = $region76
        $region75: #{tpu_custom_call.1} parent=51 // pred_region
          %s825 = ssub.s32 128, 128
          %826 = vsyncadd %s817, %s825
          %s827 = smul.addr %s27, 128
          %s828 = scalar_lea.hbm %s8, %s827
          %s830 = sshll.u32 %s820, 4
          %s831 = int_to_ptr.vmem [resolvable:$true] %s830
          %833 = dma.vmem_to_hbm [thread:$0]  %s831, 128, %s828, %s817
        $region76: #{tpu_custom_call.1} parent=51 // pred_fallthru
          _
        // Predicated region
        $region77: #{tpu_custom_call.1} parent=51 // pred_check
          %p834 = pneg %p239
        $region78: #{tpu_custom_call.1} parent=51 // pred_check_branch
          %836 = sbr.rel (%p834) target = $region80
        $region79: #{tpu_custom_call.1} parent=51 // pred_region
          %s838 = ssub.s32 128, 128
          %839 = vsyncadd [#allocation11], %s838
          %s841 = sshll.u32 [#allocation10], 4
          %s842 = int_to_ptr.vmem [resolvable:$true] %s841
          %844 = dma.vmem_to_hbm [thread:$0]  %s842, 128, %s9, [#allocation11]
        $region80: #{tpu_custom_call.1} parent=51 // pred_fallthru
          _
        // Predicated region
        $region81: #{tpu_custom_call.1} parent=51 // pred_check
          %p845 = pneg %p239
        $region82: #{tpu_custom_call.1} parent=51 // pred_check_branch
          %847 = sbr.rel (%p845) target = $region84
        $region83: #{tpu_custom_call.1} parent=51 // pred_region
          %848 = dma.done [#allocation11], 128
        $region84: #{tpu_custom_call.1} parent=51 // pred_fallthru
          _
      $region52: #{tpu_custom_call.1} parent=5 // pred_fallthru
        _
      %p849 = scmp.le.s32.totalorder 2, %s22
      // Predicated region
      $region85: #{tpu_custom_call.1} parent=5 // pred_check
        %p850 = pneg %p849
      $region86: #{tpu_custom_call.1} parent=5 // pred_check_branch
        %852 = sbr.rel (%p850) target = $region88
      $region87: #{tpu_custom_call.1} parent=5 // pred_region
        %s853 = ssub.s32 %s22, 2
        // Predicated region
        $region89: #{tpu_custom_call.1} parent=87 // pred_check
          %p854 = pneg %p224
        $region90: #{tpu_custom_call.1} parent=87 // pred_check_branch
          %856 = sbr.rel (%p854) target = $region92
        $region91: #{tpu_custom_call.1} parent=87 // pred_region
          %s857 = sand.u32 %s209, 1
          %s858 = scalar_lea.sflag [#allocation5], %s857
          %s859 = sand.u32 %s209, 1
          %s860 = smul.addr %s859, 8
          %s861 = scalar_lea.vmem [#allocation9], %s860
          %862 = dma.done %s858, 128
        $region92: #{tpu_custom_call.1} parent=87 // pred_fallthru
          _
      $region88: #{tpu_custom_call.1} parent=5 // pred_fallthru
        _
    $region6: #{tpu_custom_call.1} parent=1 // loop_footer
      %s26 = sadd.s32 1, %s22
    $region7: #{tpu_custom_call.1} parent=1 // loop_footer_branch
      %21 = sbr.rel target = $region3
    $region8: #{tpu_custom_call.1} parent=1 // loop_exit
      _
    %863 = vsyncpa [#allocation4], 1
    %s864 = scalar_lea.sflag [#allocation4], 1
    %865 = vsyncpa %s864, 1
    %866 = vsyncpa [#allocation7], 1
    %867 = vsyncpa [#allocation5], 1
    %s868 = scalar_lea.sflag [#allocation5], 1
    %869 = vsyncpa %s868, 1
    %870 = vsyncpa [#allocation11], 1

</llo_original>
